<compile_context>
chip_gen: v6e
topology: v6e:2x2x1
jax: 0.10.0
libtpu: 0.0.40
codegen_flags: <defaults>
</compile_context>

<pallas_src>
import functools

import jax
import jax.numpy as jnp
from jax.experimental import pallas as pl
from jax.experimental.pallas import tpu as pltpu


def _round_up(x, m):
    return ((x + m - 1) // m) * m


def _gram_tile_kernel(act, row_ref, colT_ref, out_ref):
    # row_ref : (tm, D)  tile of rows
    # colT_ref: (D, tn)  tile of the pre-transposed input (lane-dense)
    # out_ref : (tm, tn) tile of act(rows @ cols.T)
    acc = jnp.dot(row_ref[...], colT_ref[...], preferred_element_type=jnp.float32)
    out_ref[...] = act(acc).astype(out_ref.dtype)


@functools.partial(
    jax.jit,
    static_argnames=("tm", "tn", "out_dtype", "compute_dtype", "act"),
)
def inner_product_decoder(
    inputs,
    *,
    tm=None,
    tn=None,
    out_dtype=None,
    compute_dtype=None,
    act=None,
):
    """inputs: (N, D) float array.  Returns act(inputs @ inputs.T), shape (N, N).

    Eval-mode semantics of the PyTorch InnerProductDecoder (dropout is
    identity, `act` defaults to identity as in the reference module).
    `out_dtype=jnp.bfloat16` halves output HBM writeback (opt-in, lower
    precision scores); `compute_dtype=jnp.bfloat16` speeds up the MXU for
    large D while keeping f32 accumulation.
    """
    N, D = inputs.shape
    if out_dtype is None:
        out_dtype = inputs.dtype
    if compute_dtype is None:
        compute_dtype = inputs.dtype
    act_fn = act if act is not None else (lambda v: v)

    in_bytes = jnp.dtype(compute_dtype).itemsize
    out_bytes = jnp.dtype(out_dtype).itemsize

    # ---- Tile selection (static, shape-derived Python ints) ----------------
    if tn is None:
        tn = 512
    if tm is None:
        # Col-operand HBM re-read traffic scales as N^2 * D * in_bytes / tm:
        # grow the row band with D.
        tm = 1024 if D >= 256 else 512
    # Clamp to the problem size (avoid over-padding / degenerate huge tiles).
    tm = min(tm, _round_up(N, 8))      # tm must be a multiple of 8
    tn = min(tn, _round_up(N, 128))    # tn must be a multiple of 128

    # VMEM guard: 2x double-buffered input tiles + 2x output tile must fit
    # comfortably inside v7x's 64 MiB (and v5e's 16 MiB scoped default via an
    # explicit limit below).
    def _vmem_est(tm_, tn_):
        return 2 * (tm_ * D + D * tn_) * in_bytes + 2 * tm_ * tn_ * out_bytes

    budget = 48 * (1 << 20)
    while _vmem_est(tm, tn) > budget and (tm > 8 or tn > 128):
        if tm >= tn and tm > 8:
            tm = max(8, tm // 2)
        elif tn > 128:
            tn = max(128, tn // 2)
        else:
            break
    vmem_limit = int(min(64 * (1 << 20), max(32 * (1 << 20), 2 * _vmem_est(tm, tn))))

    # ---- Separate row / column padding (no lcm over-padding) ---------------
    n_rows = _round_up(N, tm)
    n_cols = _round_up(N, tn)

    x_rows = inputs
    if n_rows != N:
        x_rows = jnp.pad(inputs, ((0, n_rows - N), (0, 0)))
    x_cols = inputs
    if n_cols != N:
        x_cols = jnp.pad(inputs, ((0, n_cols - N), (0, 0)))

    if compute_dtype != inputs.dtype:
        x_rows = x_rows.astype(compute_dtype)
        x_cols = x_cols.astype(compute_dtype)

    # Pre-transpose the column operand once (cheap O(N*D) XLA op) so the
    # kernel's rhs is lane-dense and needs no per-tile transpose.
    xt = x_cols.T  # (D, n_cols)

    grid = (n_rows // tm, n_cols // tn)

    out = pl.pallas_call(
        functools.partial(_gram_tile_kernel, act_fn),
        out_shape=jax.ShapeDtypeStruct((n_rows, n_cols), out_dtype),
        grid_spec=pl.GridSpec(
            grid=grid,
            in_specs=[
                # Row tile: changes only along the outer grid axis; stays
                # resident in VMEM across the inner j loop.
                pl.BlockSpec((tm, D), lambda i, j: (i, 0)),
                # Pre-transposed column tile: lane-dense last dim = tn.
                pl.BlockSpec((D, tn), lambda i, j: (0, j)),
            ],
            out_specs=pl.BlockSpec((tm, tn), lambda i, j: (i, j)),
        ),
        compiler_params=pltpu.CompilerParams(
            # No reduction grid axis -> both axes parallel (megacore on v7x).
            dimension_semantics=("parallel", "parallel"),
            vmem_limit_bytes=vmem_limit,
        ),
    )(x_rows, xt)

    if n_rows != N or n_cols != N:
        out = out[:N, :N]
    return out


if __name__ == "__main__":
    key = jax.random.PRNGKey(0)

    # Case 1: N not a multiple of tile sizes (exercises separate row/col
    # padding + corner slice), identity activation (module default).
    N1, D1 = 200, 16
    x1 = jax.random.normal(key, (N1, D1), dtype=jnp.float32)
    out1 = jax.block_until_ready(inner_product_decoder(x1))
    ref1 = x1 @ x1.T
    assert out1.shape == (N1, N1)
    assert jnp.allclose(out1, ref1, atol=1e-4, rtol=1e-4), "mismatch (padded case)"

    # Case 2: multi-tile grid (2x2 tiles of 256), identity activation.
    N2, D2 = 512, 32
    x2 = jax.random.normal(jax.random.PRNGKey(1), (N2, D2), dtype=jnp.float32)
    out2 = jax.block_until_ready(inner_product_decoder(x2, tm=256, tn=256))
    ref2 = x2 @ x2.T
    assert out2.shape == (N2, N2)
    assert jnp.allclose(out2, ref2, atol=1e-4, rtol=1e-4), "mismatch (multi-tile case)"

    # Case 3: fused sigmoid activation (common GAE usage), done in-kernel on
    # the f32 accumulator so no extra N^2 HBM round-trip is needed.
    out3 = jax.block_until_ready(
        inner_product_decoder(x2, tm=256, tn=256, act=jax.nn.sigmoid)
    )
    ref3 = jax.nn.sigmoid(x2 @ x2.T)
    assert jnp.allclose(out3, ref3, atol=1e-5, rtol=1e-5), "mismatch (fused sigmoid)"

    # Case 4: bf16 output writeback (opt-in, halves output HBM traffic).
    out4 = jax.block_until_ready(
        inner_product_decoder(x2, tm=256, tn=256, out_dtype=jnp.bfloat16)
    )
    assert out4.dtype == jnp.bfloat16
    assert jnp.allclose(
        out4.astype(jnp.float32), ref2, atol=2e-1, rtol=2e-2
    ), "mismatch (bf16 output)"

    print("KERNEL_OK")
</pallas_src>

<mosaic_0001>
module attributes {stable_mosaic.version = 11 : i64} {
  func.func @_gram_tile_kernel(%arg0: i32, %arg1: i32, %arg2: memref<200x16xf32, #tpu.memory_space<vmem>>, %arg3: memref<16x256xf32, #tpu.memory_space<vmem>>, %arg4: memref<200x256xf32, #tpu.memory_space<vmem>>) attributes {dimension_semantics = [#tpu.dimension_semantics<parallel>, #tpu.dimension_semantics<parallel>], iteration_bounds = array<i64: 1, 1>, scalar_prefetch = 0 : i64, scratch_operands = 0 : i64, tpu.core_type = #tpu.core_type<tc>, window_params = [{transform_indices = @transform_0, window_bounds = array<i64: 200, 16>}, {transform_indices = @transform_1, window_bounds = array<i64: 16, 256>}, {transform_indices = @transform_2, window_bounds = array<i64: 200, 256>}]} {
    %c0 = arith.constant 0 : index
    %c0_0 = arith.constant 0 : index
    %0 = vector.load %arg2[%c0, %c0_0] : memref<200x16xf32, #tpu.memory_space<vmem>>, vector<200x16xf32>
    %c0_1 = arith.constant 0 : index
    %c0_2 = arith.constant 0 : index
    %1 = vector.load %arg3[%c0_1, %c0_2] : memref<16x256xf32, #tpu.memory_space<vmem>>, vector<16x256xf32>
    %cst = arith.constant dense<0.000000e+00> : vector<200x256xf32>
    %2 = tpu.matmul %0, %1, %cst {dimension_numbers = #tpu.dot_dimension_numbers<[1], [0], [0], [1], [0, 0, 1, 1], [], []>} : vector<200x16xf32>, vector<16x256xf32>, vector<200x256xf32> -> vector<200x256xf32>
    %c0_3 = arith.constant 0 : index
    %c0_4 = arith.constant 0 : index
    %3 = vector.load %arg4[%c0_3, %c0_4] : memref<200x256xf32, #tpu.memory_space<vmem>>, vector<200x256xf32>
    tpu.vector_store %arg4[%c0_3, %c0_4], %2 {strides = array<i32>} : memref<200x256xf32, #tpu.memory_space<vmem>>, vector<200x256xf32>,
    return
  }
  func.func @transform_0(%arg0: i32, %arg1: i32) -> (i32, i32) {
    %c0_i32 = arith.constant 0 : i32
    %c0_i32_0 = arith.constant 0 : i32
    return %arg0, %c0_i32 : i32, i32
  }
  func.func @transform_1(%arg0: i32, %arg1: i32) -> (i32, i32) {
    %c0_i32 = arith.constant 0 : i32
    %c0_i32_0 = arith.constant 0 : i32
    return %c0_i32, %arg1 : i32, i32
  }
  func.func @transform_2(%arg0: i32, %arg1: i32) -> (i32, i32) {
    %c0_i32 = arith.constant 0 : i32
    return %arg0, %arg1 : i32, i32
  }
}

</mosaic_0001>

<llo_original>
// kernel: inner_product_decoder.1
$region0: #{inner_product_decoder.1}
  #allocation0 [shape = 'u32[]', space=smem, size = 0x4, offset = 0x4, fixed_abs, tag = 'smem constant byte address 0x4 - core index']
  #allocation1 [shape = 'u32[144,128]{1,0:T(1,128)}', space=vmem, size = 0x12000, scoped, tag = 'internal scratch']
  %s0 = inlined_call_operand.vmem [shape: f32[200,16], index: 0, kind: input, shape index: {}]
  %s1 = inlined_call_operand.vmem [shape: f32[16,256], index: 1, kind: input, shape index: {}]
  %s2 = inlined_call_operand.hbm [shape: f32[200,256], index: 2, kind: output, shape index: {}]
  %s3 = sld [smem:[#allocation0]]
  $region18: #{inner_product_decoder.1} parent=0
    _
  %s5 = ssub.s32 1, %s3
  %s6 = scalar_select 0, %s5, %s3
  $region1: #{inner_product_decoder.1} parent=0
    #allocation2 [shape = 'u8[204800]{0}', space=vmem, size = 0x32000, scoped, tag = 'output window, operand 0, single buffered']
    #allocation3 [shape = 's32[1]{0}', space=sflag, size = 0x4, scoped, tag = 'scoped memory for inner_product_decoder.1']
    %7 = vsyncpa [#allocation3], 0
    // Predicated region
    $region2: #{inner_product_decoder.1} parent=1 // pred_check
      _
    $region3: #{inner_product_decoder.1} parent=1 // pred_check_branch
      %9 = sbr.rel (0) target = $region5
    $region4: #{inner_product_decoder.1} parent=1 // pred_region
      _
    $region5: #{inner_product_decoder.1} parent=1 // pred_fallthru
      _
    // Predicated region
    $region6: #{inner_product_decoder.1} parent=1 // pred_check
      _
    $region7: #{inner_product_decoder.1} parent=1 // pred_check_branch
      %11 = sbr.rel (0) target = $region9
    $region8: #{inner_product_decoder.1} parent=1 // pred_region
      _
    $region9: #{inner_product_decoder.1} parent=1 // pred_fallthru
      _
    %v12 = vld [vmem:[%s0] sm:$0xff]
    %v13 = vld [vmem:[%s0 + $0x8] sm:$0xff]
    %v14 = vld [vmem:[%s0 + $0x10] sm:$0xff]
    %v15 = vld [vmem:[%s0 + $0x18] sm:$0xff]
    %v16 = vld [vmem:[%s0 + $0x20] sm:$0xff]
    %v17 = vld [vmem:[%s0 + $0x28] sm:$0xff]
    %v18 = vld [vmem:[%s0 + $0x30] sm:$0xff]
    %v19 = vld [vmem:[%s0 + $0x38] sm:$0xff]
    %v20 = vld [vmem:[%s0 + $0x40] sm:$0xff]
    %v21 = vld [vmem:[%s0 + $0x48] sm:$0xff]
    %v22 = vld [vmem:[%s0 + $0x50] sm:$0xff]
    %v23 = vld [vmem:[%s0 + $0x58] sm:$0xff]
    %v24 = vld [vmem:[%s0 + $0x60] sm:$0xff]
    %v25 = vld [vmem:[%s0 + $0x68] sm:$0xff]
    %v26 = vld [vmem:[%s0 + $0x70] sm:$0xff]
    %v27 = vld [vmem:[%s0 + $0x78] sm:$0xff]
    %v28 = vld [vmem:[%s0 + $0x80] sm:$0xff]
    %v29 = vld [vmem:[%s0 + $0x88] sm:$0xff]
    %v30 = vld [vmem:[%s0 + $0x90] sm:$0xff]
    %v31 = vld [vmem:[%s0 + $0x98] sm:$0xff]
    %v32 = vld [vmem:[%s0 + $0xa0] sm:$0xff]
    %v33 = vld [vmem:[%s0 + $0xa8] sm:$0xff]
    %v34 = vld [vmem:[%s0 + $0xb0] sm:$0xff]
    %v35 = vld [vmem:[%s0 + $0xb8] sm:$0xff]
    %v36 = vld [vmem:[%s0 + $0xc0] sm:$0xff]
    %v37 = vld [vmem:[%s1] sm:$0xff]
    %v38 = vld [vmem:[%s1 + $0x8] sm:$0xff]
    %v39 = vld [vmem:[%s1 + $0x10] sm:$0xff]
    %v40 = vld [vmem:[%s1 + $0x18] sm:$0xff]
    %vm41 = vcmask 130048
    %v43 = vsel %vm41, %v12, 0
    %v46 = vsel %vm41, %v13, 0
    %v49 = vsel %vm41, %v14, 0
    %v52 = vsel %vm41, %v15, 0
    %v55 = vsel %vm41, %v16, 0
    %v58 = vsel %vm41, %v17, 0
    %v61 = vsel %vm41, %v18, 0
    %v64 = vsel %vm41, %v19, 0
    %v67 = vsel %vm41, %v20, 0
    %v70 = vsel %vm41, %v21, 0
    %v73 = vsel %vm41, %v22, 0
    %v76 = vsel %vm41, %v23, 0
    %v79 = vsel %vm41, %v24, 0
    %v82 = vsel %vm41, %v25, 0
    %v85 = vsel %vm41, %v26, 0
    %v88 = vsel %vm41, %v27, 0
    %v91 = vsel %vm41, %v28, 0
    %v94 = vsel %vm41, %v29, 0
    %v97 = vsel %vm41, %v30, 0
    %v100 = vsel %vm41, %v31, 0
    %v103 = vsel %vm41, %v32, 0
    %v106 = vsel %vm41, %v33, 0
    %v109 = vsel %vm41, %v34, 0
    %v112 = vsel %vm41, %v35, 0
    %v115 = vsel %vm41, %v36, 0
    %117 = vmatprep.subr.mxu0 0.0
    %118 = vmatpush1.msra.mxu0 0.0
    %119 = vmatprep.subr.mxu0 0.0
    %120 = vmatpush1.msra.mxu0 0.0
    %121 = vmatprep.subr.mxu0 0.0
    %122 = vmatpush1.msra.mxu0 0.0
    %123 = vmatprep.subr.mxu0 0.0
    %124 = vmatpush1.msra.mxu0 0.0
    %125 = vmatprep.subr.mxu0 0.0
    %126 = vmatpush1.msra.mxu0 0.0
    %127 = vmatprep.subr.mxu0 0.0
    %128 = vmatpush1.msra.mxu0 0.0
    %129 = vmatprep.subr.mxu0 0.0
    %130 = vmatpush1.msra.mxu0 0.0
    %131 = vmatprep.subr.mxu0 0.0
    %132 = vmatpush1.msra.mxu0 0.0
    %133 = vmatprep.subr.mxu0 0.0
    %134 = vmatpush1.msra.mxu0 0.0
    %135 = vmatprep.subr.mxu0 0.0
    %136 = vmatpush1.msra.mxu0 0.0
    %137 = vmatprep.subr.mxu0 0.0
    %138 = vmatpush1.msra.mxu0 0.0
    %139 = vmatprep.subr.mxu0 0.0
    %140 = vmatpush1.msra.mxu0 0.0
    %141 = vmatprep.subr.mxu0 0.0
    %142 = vmatpush1.msra.mxu0 0.0
    %143 = vmatprep.subr.mxu0 0.0
    %144 = vmatpush1.msra.mxu0 0.0
    %145 = vmatprep.subr.mxu0 %v40
    %146 = vmatpush1.msra.mxu0 %v39
    %147 = vmatprep.subr.mxu0 %v38
    %148 = vmatpush1.msra.mxu0 %v37
    %149 = vmatprep.subr.mxu0 0.0
    %150 = vmatpush2.msra.mxu0 0.0
    %151 = vmatprep.subr.mxu0 0.0
    %152 = vmatpush2.msra.mxu0 0.0
    %153 = vmatprep.subr.mxu0 0.0
    %154 = vmatpush2.msra.mxu0 0.0
    %155 = vmatprep.subr.mxu0 0.0
    %156 = vmatpush2.msra.mxu0 0.0
    %157 = vmatprep.subr.mxu0 0.0
    %158 = vmatpush2.msra.mxu0 0.0
    %159 = vmatprep.subr.mxu0 0.0
    %160 = vmatpush2.msra.mxu0 0.0
    %161 = vmatprep.subr.mxu0 0.0
    %162 = vmatpush2.msra.mxu0 0.0
    %163 = vmatprep.subr.mxu0 0.0
    %164 = vmatpush2.msra.mxu0 0.0
    %165 = vmatprep.subr.mxu0 0.0
    %166 = vmatpush2.msra.mxu0 0.0
    %167 = vmatprep.subr.mxu0 0.0
    %168 = vmatpush2.msra.mxu0 0.0
    %169 = vmatprep.subr.mxu0 0.0
    %170 = vmatpush2.msra.mxu0 0.0
    %171 = vmatprep.subr.mxu0 0.0
    %172 = vmatpush2.msra.mxu0 0.0
    %173 = vmatprep.subr.mxu0 0.0
    %174 = vmatpush2.msra.mxu0 0.0
    %175 = vmatprep.subr.mxu0 0.0
    %176 = vmatpush2.msra.mxu0 0.0
    %177 = vmatprep.subr.mxu0 0.0
    %178 = vmatpush2.msra.mxu0 0.0
    %179 = vmatprep.subr.mxu0 0.0
    %180 = vmatpush2.msra.mxu0 0.0
    %181 = vmatprep.mubr.f32.mxu0 0.0
    %182 = vmatmul.mubr.f32.gmra.mxu0 %v43
    %v183 = vpop.f32.mrf.mxu0
    %v184 = vadd.f32 0.0, %v183
    %v185 = vpop.f32.mrf.mxu0
    %v186 = vadd.f32 0.0, %v185
    %187 = vmatprep.mubr.f32.mxu0 0.0
    %188 = vmatmul.mubr.f32.gmra.mxu0 %v46
    %v189 = vpop.f32.mrf.mxu0
    %v190 = vadd.f32 0.0, %v189
    %v191 = vpop.f32.mrf.mxu0
    %v192 = vadd.f32 0.0, %v191
    %193 = vmatprep.mubr.f32.mxu0 0.0
    %194 = vmatmul.mubr.f32.gmra.mxu0 %v49
    %v195 = vpop.f32.mrf.mxu0
    %v196 = vadd.f32 0.0, %v195
    %v197 = vpop.f32.mrf.mxu0
    %v198 = vadd.f32 0.0, %v197
    %199 = vmatprep.mubr.f32.mxu0 0.0
    %200 = vmatmul.mubr.f32.gmra.mxu0 %v52
    %v201 = vpop.f32.mrf.mxu0
    %v202 = vadd.f32 0.0, %v201
    %v203 = vpop.f32.mrf.mxu0
    %v204 = vadd.f32 0.0, %v203
    %205 = vmatprep.mubr.f32.mxu0 0.0
    %206 = vmatmul.mubr.f32.gmra.mxu0 %v55
    %v207 = vpop.f32.mrf.mxu0
    %v208 = vadd.f32 0.0, %v207
    %v209 = vpop.f32.mrf.mxu0
    %v210 = vadd.f32 0.0, %v209
    %211 = vmatprep.mubr.f32.mxu0 0.0
    %212 = vmatmul.mubr.f32.gmra.mxu0 %v58
    %v213 = vpop.f32.mrf.mxu0
    %v214 = vadd.f32 0.0, %v213
    %v215 = vpop.f32.mrf.mxu0
    %v216 = vadd.f32 0.0, %v215
    %217 = vmatprep.mubr.f32.mxu0 0.0
    %218 = vmatmul.mubr.f32.gmra.mxu0 %v61
    %v219 = vpop.f32.mrf.mxu0
    %v220 = vadd.f32 0.0, %v219
    %v221 = vpop.f32.mrf.mxu0
    %v222 = vadd.f32 0.0, %v221
    %223 = vmatprep.mubr.f32.mxu0 0.0
    %224 = vmatmul.mubr.f32.gmra.mxu0 %v64
    %v225 = vpop.f32.mrf.mxu0
    %v226 = vadd.f32 0.0, %v225
    %v227 = vpop.f32.mrf.mxu0
    %v228 = vadd.f32 0.0, %v227
    %229 = vmatprep.mubr.f32.mxu0 0.0
    %230 = vmatmul.mubr.f32.gmra.mxu0 %v67
    %v231 = vpop.f32.mrf.mxu0
    %v232 = vadd.f32 0.0, %v231
    %v233 = vpop.f32.mrf.mxu0
    %v234 = vadd.f32 0.0, %v233
    %235 = vmatprep.mubr.f32.mxu0 0.0
    %236 = vmatmul.mubr.f32.gmra.mxu0 %v70
    %v237 = vpop.f32.mrf.mxu0
    %v238 = vadd.f32 0.0, %v237
    %v239 = vpop.f32.mrf.mxu0
    %v240 = vadd.f32 0.0, %v239
    %241 = vmatprep.mubr.f32.mxu0 0.0
    %242 = vmatmul.mubr.f32.gmra.mxu0 %v73
    %v243 = vpop.f32.mrf.mxu0
    %v244 = vadd.f32 0.0, %v243
    %v245 = vpop.f32.mrf.mxu0
    %v246 = vadd.f32 0.0, %v245
    %247 = vmatprep.mubr.f32.mxu0 0.0
    %248 = vmatmul.mubr.f32.gmra.mxu0 %v76
    %v249 = vpop.f32.mrf.mxu0
    %v250 = vadd.f32 0.0, %v249
    %v251 = vpop.f32.mrf.mxu0
    %v252 = vadd.f32 0.0, %v251
    %253 = vmatprep.mubr.f32.mxu0 0.0
    %254 = vmatmul.mubr.f32.gmra.mxu0 %v79
    %v255 = vpop.f32.mrf.mxu0
    %v256 = vadd.f32 0.0, %v255
    %v257 = vpop.f32.mrf.mxu0
    %v258 = vadd.f32 0.0, %v257
    %259 = vmatprep.mubr.f32.mxu0 0.0
    %260 = vmatmul.mubr.f32.gmra.mxu0 %v82
    %v261 = vpop.f32.mrf.mxu0
    %v262 = vadd.f32 0.0, %v261
    %v263 = vpop.f32.mrf.mxu0
    %v264 = vadd.f32 0.0, %v263
    %265 = vmatprep.mubr.f32.mxu0 0.0
    %266 = vmatmul.mubr.f32.gmra.mxu0 %v85
    %v267 = vpop.f32.mrf.mxu0
    %v268 = vadd.f32 0.0, %v267
    %v269 = vpop.f32.mrf.mxu0
    %v270 = vadd.f32 0.0, %v269
    %271 = vmatprep.mubr.f32.mxu0 0.0
    %272 = vmatmul.mubr.f32.gmra.mxu0 %v88
    %v273 = vpop.f32.mrf.mxu0
    %v274 = vadd.f32 0.0, %v273
    %v275 = vpop.f32.mrf.mxu0
    %v276 = vadd.f32 0.0, %v275
    %277 = vmatprep.mubr.f32.mxu0 0.0
    %278 = vmatmul.mubr.f32.gmra.mxu0 %v91
    %v279 = vpop.f32.mrf.mxu0
    %v280 = vadd.f32 0.0, %v279
    %v281 = vpop.f32.mrf.mxu0
    %v282 = vadd.f32 0.0, %v281
    %283 = vmatprep.mubr.f32.mxu0 0.0
    %284 = vmatmul.mubr.f32.gmra.mxu0 %v94
    %v285 = vpop.f32.mrf.mxu0
    %v286 = vadd.f32 0.0, %v285
    %v287 = vpop.f32.mrf.mxu0
    %v288 = vadd.f32 0.0, %v287
    %289 = vmatprep.mubr.f32.mxu0 0.0
    %290 = vmatmul.mubr.f32.gmra.mxu0 %v97
    %v291 = vpop.f32.mrf.mxu0
    %v292 = vadd.f32 0.0, %v291
    %v293 = vpop.f32.mrf.mxu0
    %v294 = vadd.f32 0.0, %v293
    %295 = vmatprep.mubr.f32.mxu0 0.0
    %296 = vmatmul.mubr.f32.gmra.mxu0 %v100
    %v297 = vpop.f32.mrf.mxu0
    %v298 = vadd.f32 0.0, %v297
    %v299 = vpop.f32.mrf.mxu0
    %v300 = vadd.f32 0.0, %v299
    %301 = vmatprep.mubr.f32.mxu0 0.0
    %302 = vmatmul.mubr.f32.gmra.mxu0 %v103
    %v303 = vpop.f32.mrf.mxu0
    %v304 = vadd.f32 0.0, %v303
    %v305 = vpop.f32.mrf.mxu0
    %v306 = vadd.f32 0.0, %v305
    %307 = vmatprep.mubr.f32.mxu0 0.0
    %308 = vmatmul.mubr.f32.gmra.mxu0 %v106
    %v309 = vpop.f32.mrf.mxu0
    %v310 = vadd.f32 0.0, %v309
    %v311 = vpop.f32.mrf.mxu0
    %v312 = vadd.f32 0.0, %v311
    %313 = vmatprep.mubr.f32.mxu0 0.0
    %314 = vmatmul.mubr.f32.gmra.mxu0 %v109
    %v315 = vpop.f32.mrf.mxu0
    %v316 = vadd.f32 0.0, %v315
    %v317 = vpop.f32.mrf.mxu0
    %v318 = vadd.f32 0.0, %v317
    %319 = vmatprep.mubr.f32.mxu0 0.0
    %320 = vmatmul.mubr.f32.gmra.mxu0 %v112
    %v321 = vpop.f32.mrf.mxu0
    %v322 = vadd.f32 0.0, %v321
    %v323 = vpop.f32.mrf.mxu0
    %v324 = vadd.f32 0.0, %v323
    %325 = vmatprep.mubr.f32.mxu0 0.0
    %326 = vmatmul.mubr.f32.gmra.mxu0 %v115
    %v327 = vpop.f32.mrf.mxu0
    %v328 = vadd.f32 0.0, %v327
    %v329 = vpop.f32.mrf.mxu0
    %v330 = vadd.f32 0.0, %v329
    %331 = vdwg.mxu0
    %332 = vst [vmem:[#allocation2] sm:$0xff] %v184
    %333 = vst [vmem:[#allocation2 + $0x8] sm:$0xff] %v186
    %334 = vst [vmem:[#allocation2 + $0x10] sm:$0xff] %v190
    %335 = vst [vmem:[#allocation2 + $0x18] sm:$0xff] %v192
    %336 = vst [vmem:[#allocation2 + $0x20] sm:$0xff] %v196
    %337 = vst [vmem:[#allocation2 + $0x28] sm:$0xff] %v198
    %338 = vst [vmem:[#allocation2 + $0x30] sm:$0xff] %v202
    %339 = vst [vmem:[#allocation2 + $0x38] sm:$0xff] %v204
    %340 = vst [vmem:[#allocation2 + $0x40] sm:$0xff] %v208
    %341 = vst [vmem:[#allocation2 + $0x48] sm:$0xff] %v210
    %342 = vst [vmem:[#allocation2 + $0x50] sm:$0xff] %v214
    %343 = vst [vmem:[#allocation2 + $0x58] sm:$0xff] %v216
    %344 = vst [vmem:[#allocation2 + $0x60] sm:$0xff] %v220
    %345 = vst [vmem:[#allocation2 + $0x68] sm:$0xff] %v222
    %346 = vst [vmem:[#allocation2 + $0x70] sm:$0xff] %v226
    %347 = vst [vmem:[#allocation2 + $0x78] sm:$0xff] %v228
    %348 = vst [vmem:[#allocation2 + $0x80] sm:$0xff] %v232
    %349 = vst [vmem:[#allocation2 + $0x88] sm:$0xff] %v234
    %350 = vst [vmem:[#allocation2 + $0x90] sm:$0xff] %v238
    %351 = vst [vmem:[#allocation2 + $0x98] sm:$0xff] %v240
    %352 = vst [vmem:[#allocation2 + $0xa0] sm:$0xff] %v244
    %353 = vst [vmem:[#allocation2 + $0xa8] sm:$0xff] %v246
    %354 = vst [vmem:[#allocation2 + $0xb0] sm:$0xff] %v250
    %355 = vst [vmem:[#allocation2 + $0xb8] sm:$0xff] %v252
    %356 = vst [vmem:[#allocation2 + $0xc0] sm:$0xff] %v256
    %357 = vst [vmem:[#allocation2 + $0xc8] sm:$0xff] %v258
    %358 = vst [vmem:[#allocation2 + $0xd0] sm:$0xff] %v262
    %359 = vst [vmem:[#allocation2 + $0xd8] sm:$0xff] %v264
    %360 = vst [vmem:[#allocation2 + $0xe0] sm:$0xff] %v268
    %361 = vst [vmem:[#allocation2 + $0xe8] sm:$0xff] %v270
    %362 = vst [vmem:[#allocation2 + $0xf0] sm:$0xff] %v274
    %363 = vst [vmem:[#allocation2 + $0xf8] sm:$0xff] %v276
    %364 = vst [vmem:[#allocation2 + $0x100] sm:$0xff] %v280
    %365 = vst [vmem:[#allocation2 + $0x108] sm:$0xff] %v282
    %366 = vst [vmem:[#allocation2 + $0x110] sm:$0xff] %v286
    %367 = vst [vmem:[#allocation2 + $0x118] sm:$0xff] %v288
    %368 = vst [vmem:[#allocation2 + $0x120] sm:$0xff] %v292
    %369 = vst [vmem:[#allocation2 + $0x128] sm:$0xff] %v294
    %370 = vst [vmem:[#allocation2 + $0x130] sm:$0xff] %v298
    %371 = vst [vmem:[#allocation2 + $0x138] sm:$0xff] %v300
    %372 = vst [vmem:[#allocation2 + $0x140] sm:$0xff] %v304
    %373 = vst [vmem:[#allocation2 + $0x148] sm:$0xff] %v306
    %374 = vst [vmem:[#allocation2 + $0x150] sm:$0xff] %v310
    %375 = vst [vmem:[#allocation2 + $0x158] sm:$0xff] %v312
    %376 = vst [vmem:[#allocation2 + $0x160] sm:$0xff] %v316
    %377 = vst [vmem:[#allocation2 + $0x168] sm:$0xff] %v318
    %378 = vst [vmem:[#allocation2 + $0x170] sm:$0xff] %v322
    %379 = vst [vmem:[#allocation2 + $0x178] sm:$0xff] %v324
    %380 = vst [vmem:[#allocation2 + $0x180] sm:$0xff] %v328
    %381 = vst [vmem:[#allocation2 + $0x188] sm:$0xff] %v330
    // Predicated region
    $region10: #{inner_product_decoder.1} parent=1 // pred_check
      _
    $region11: #{inner_product_decoder.1} parent=1 // pred_check_branch
      %383 = sbr.rel (0) target = $region13
    $region12: #{inner_product_decoder.1} parent=1 // pred_region
      %s385 = ssub.s32 6400, 6400
      %386 = vsyncadd [#allocation3], %s385
      %s387 = sshll.u32 [#allocation2], 4
      %s388 = int_to_ptr.vmem [resolvable:$true] %s387
      %393 = dma.vmem_to_hbm [thread:$0]  %s388, 6400, %s2, [#allocation3], 256, 256, 16
    $region13: #{inner_product_decoder.1} parent=1 // pred_fallthru
      _
    // Predicated region
    $region14: #{inner_product_decoder.1} parent=1 // pred_check
      _
    $region15: #{inner_product_decoder.1} parent=1 // pred_check_branch
      %395 = sbr.rel (0) target = $region17
    $region16: #{inner_product_decoder.1} parent=1 // pred_region
      %396 = dma.done [#allocation3], 6400
    $region17: #{inner_product_decoder.1} parent=1 // pred_fallthru
      _
    %397 = vsyncpa [#allocation3], 1

</llo_original>
